<compile_context>
chip_gen: v5e
topology: v5e:2x2
jax: 0.10.0
libtpu: 0.0.40
codegen_flags: <defaults>
</compile_context>

<pallas_src>
import functools
import math

import jax
import jax.numpy as jnp
from jax import lax
from jax.experimental import pallas as pl
from jax.experimental.pallas import tpu as pltpu

DS = 512            # ds / dt / df / patch_dim / text_dim
TOK_DIM = 768       # text_tokens_dim
GA_D = 128          # gated-attention hidden dim (ABMIL standard)
N_HEADS = 8
HEAD_DIM = DS // N_HEADS      # trans-layer (stand-in) head dim
CROSS_DK = DS                 # CrossAttention per-head k_dim / v_dim

_VMEM = pl.BlockSpec(memory_space=pltpu.MemorySpace.VMEM)
_VMEM_LIMIT = 48 * 1024 * 1024     # <= 64 MiB physical VMEM on v7x


def _cparams(*semantics):
    if semantics:
        return pltpu.CompilerParams(dimension_semantics=semantics,
                                    vmem_limit_bytes=_VMEM_LIMIT)
    return pltpu.CompilerParams(vmem_limit_bytes=_VMEM_LIMIT)


# ----------------------------------------------------------------------------
# in-kernel helpers
# ----------------------------------------------------------------------------
def _layer_norm(x, g, b):
    mu = jnp.mean(x, axis=-1, keepdims=True)
    var = jnp.mean((x - mu) * (x - mu), axis=-1, keepdims=True)
    return (x - mu) * lax.rsqrt(var + 1e-5) * g + b


def _softmax_last(s):
    s = s - jnp.max(s, axis=-1, keepdims=True)
    p = jnp.exp(s)
    return p / jnp.sum(p, axis=-1, keepdims=True)


# ----------------------------------------------------------------------------
# Pallas kernels
# ----------------------------------------------------------------------------
def _linear_kernel(x_ref, w_ref, b_ref, o_ref, *, relu):
    y = jnp.dot(x_ref[...], w_ref[...], preferred_element_type=jnp.float32)
    y = y + b_ref[...]
    if relu:
        y = jnp.maximum(y, 0.0)
    o_ref[...] = y


def _dwconv_kernel(xp_ref, w7_ref, w5_ref, w3_ref, b_ref, o_ref, *, L):
    # depthwise conv1d (k=7,5,3, same padding) + identity residual, all fused.
    acc = xp_ref[pl.ds(3, L), :] + b_ref[...]
    for k in range(7):
        acc = acc + w7_ref[k, :] * xp_ref[pl.ds(k, L), :]
    for k in range(5):
        acc = acc + w5_ref[k, :] * xp_ref[pl.ds(k + 1, L), :]
    for k in range(3):
        acc = acc + w3_ref[k, :] * xp_ref[pl.ds(k + 2, L), :]
    o_ref[...] = acc


def _trans_layer_kernel(x_ref, g_ref, b_ref, wqkv_ref, wo_ref, bo_ref, o_ref):
    # TODO(synk): TransLayer stand-in = pre-norm residual 8-head self-attention.
    x = x_ref[...]                                               # (N, 512) f32
    xn = _layer_norm(x, g_ref[...], b_ref[...])
    qkv = jnp.dot(xn.astype(jnp.bfloat16), wqkv_ref[...],
                  preferred_element_type=jnp.float32)            # (N, 1536)
    scale = 1.0 / math.sqrt(HEAD_DIM)
    heads = []
    for h in range(N_HEADS):
        q = qkv[:, h * HEAD_DIM:(h + 1) * HEAD_DIM]
        k = qkv[:, DS + h * HEAD_DIM:DS + (h + 1) * HEAD_DIM]
        v = qkv[:, 2 * DS + h * HEAD_DIM:2 * DS + (h + 1) * HEAD_DIM]
        s = lax.dot_general(q, k, (((1,), (1,)), ((), ())),
                            preferred_element_type=jnp.float32) * scale
        p = _softmax_last(s)
        heads.append(jnp.dot(p, v, preferred_element_type=jnp.float32))
    o = jnp.concatenate(heads, axis=-1)                          # (N, 512)
    o_ref[...] = x + jnp.dot(o.astype(jnp.bfloat16), wo_ref[...],
                             preferred_element_type=jnp.float32) + bo_ref[...]


def _cross_attn_kernel(qx_ref, kvx_ref, g_ref, b_ref,
                       wq_ref, wk_ref, wv_ref, wo_ref, o_ref, *, scale):
    # one grid step == one head; LN of query/kv folded in (cheap, recomputed).
    qn = _layer_norm(qx_ref[...], g_ref[...], b_ref[...])        # (T1, 512)
    kvn = _layer_norm(kvx_ref[...], g_ref[...], b_ref[...])      # (T2, 512)
    q = jnp.dot(qn.astype(jnp.bfloat16), wq_ref[...],
                preferred_element_type=jnp.float32)              # (T1, 512)
    k = jnp.dot(kvn.astype(jnp.bfloat16), wk_ref[...],
                preferred_element_type=jnp.float32)              # (T2, 512)
    v = jnp.dot(kvn.astype(jnp.bfloat16), wv_ref[...],
                preferred_element_type=jnp.float32)              # (T2, 512)
    s = lax.dot_general(q, k, (((1,), (1,)), ((), ())),
                        preferred_element_type=jnp.float32) * scale
    p = _softmax_last(s)
    oh = jnp.dot(p, v, preferred_element_type=jnp.float32)       # (T1, 512)
    # per-head partial of the output projection; summed (+bias) outside.
    o_ref[0] = jnp.dot(oh.astype(jnp.bfloat16), wo_ref[...],
                       preferred_element_type=jnp.float32)


def _gated_attn_kernel(h_ref, g_ref, b_ref, wv_ref, bv_ref, wu_ref, bu_ref,
                       ww_ref, bw_ref, m_ref, a_ref):
    # TODO(synk): GatedAttention stand-in = ABMIL gated attention pooling.
    h = _layer_norm(h_ref[...], g_ref[...], b_ref[...])          # (N, 512)
    av = jnp.tanh(jnp.dot(h, wv_ref[...], preferred_element_type=jnp.float32)
                  + bv_ref[...])                                 # (N, 128)
    au = jax.nn.sigmoid(jnp.dot(h, wu_ref[...],
                                preferred_element_type=jnp.float32)
                        + bu_ref[...])                           # (N, 128)
    gated = av * au
    # lane-dense (1, N) attention row: ww_row (1,128) . gated^T
    a = lax.dot_general(ww_ref[...], gated, (((1,), (1,)), ((), ())),
                        preferred_element_type=jnp.float32) + bw_ref[...]
    a = _softmax_last(a)                                         # (1, N)
    m_ref[...] = jnp.dot(a, h, preferred_element_type=jnp.float32)  # (1, 512)
    a_ref[...] = a


def _fusion_cls_kernel(x_ref, wf_ref, bf_ref, wc_ref, bc_ref, f_ref, l_ref):
    f = jnp.dot(x_ref[...], wf_ref[...],
                preferred_element_type=jnp.float32) + bf_ref[...]
    f = jnp.maximum(f, 0.0)
    f_ref[...] = f
    l_ref[...] = jnp.dot(f, wc_ref[...],
                         preferred_element_type=jnp.float32) + bc_ref[...]


def _contrastive_kernel(a_ref, b_ref, s_ref, po_ref, pr_ref):
    a = a_ref[...]
    b = b_ref[...]
    a = a * lax.rsqrt(jnp.sum(a * a, axis=-1, keepdims=True) + 1e-12)
    b = b * lax.rsqrt(jnp.sum(b * b, axis=-1, keepdims=True) + 1e-12)
    M = a.shape[0]
    a_last = a[M - 1:M, :]                                       # (1, 512)
    b_last = b[M - 1:M, :]
    scale = s_ref[...]                                           # (1, 1)
    row = scale * lax.dot_general(a_last, b, (((1,), (1,)), ((), ())),
                                  preferred_element_type=jnp.float32)  # (1, M)
    col = scale * lax.dot_general(b_last, a, (((1,), (1,)), ((), ())),
                                  preferred_element_type=jnp.float32)  # (1, M)
    po_ref[...] = _softmax_last(row)
    pr_ref[...] = _softmax_last(col)


# ----------------------------------------------------------------------------
# Pallas wrappers
# ----------------------------------------------------------------------------
def linear(x, w, b, relu=False):
    M, _ = x.shape
    N = w.shape[1]
    kern = functools.partial(_linear_kernel, relu=relu)
    return pl.pallas_call(
        kern,
        out_shape=jax.ShapeDtypeStruct((M, N), jnp.float32),
        in_specs=[_VMEM] * 3,
        out_specs=_VMEM,
        compiler_params=_cparams(),
    )(x, w, b)


def conv_layer(p, x):
    # x: (L, C) == PyTorch (B=1, L, C) -> transpose -> Conv1d -> transpose back
    L, C = x.shape
    xp = jnp.pad(x, ((3, 3), (0, 0)))
    b_total = (p["b7"] + p["b5"] + p["b3"]).reshape(1, C)
    kern = functools.partial(_dwconv_kernel, L=L)
    return pl.pallas_call(
        kern,
        out_shape=jax.ShapeDtypeStruct((L, C), jnp.float32),
        in_specs=[_VMEM] * 5,
        out_specs=_VMEM,
        compiler_params=_cparams(),
    )(xp, p["w7"], p["w5"], p["w3"], b_total)


def trans_layer(p, x):
    N = x.shape[0]
    return pl.pallas_call(
        _trans_layer_kernel,
        out_shape=jax.ShapeDtypeStruct((N, DS), jnp.float32),
        in_specs=[_VMEM] * 6,
        out_specs=_VMEM,
        compiler_params=_cparams(),
    )(x, p["ln_g"], p["ln_b"], p["wqkv"], p["wo"], p["bo"])


def cross_attention(p, norm_g, norm_b, query, kv):
    # CrossAttention: 8 heads, per-head k_dim = v_dim = 512.
    T1 = query.shape[0]
    T2 = kv.shape[0]
    kern = functools.partial(_cross_attn_kernel, scale=1.0 / math.sqrt(CROSS_DK))
    partials = pl.pallas_call(
        kern,
        out_shape=jax.ShapeDtypeStruct((N_HEADS, T1, DS), jnp.float32),
        grid=(N_HEADS,),
        in_specs=[
            pl.BlockSpec((T1, DS), lambda h: (0, 0)),     # query (resident)
            pl.BlockSpec((T2, DS), lambda h: (0, 0)),     # key/value (resident)
            pl.BlockSpec((1, DS), lambda h: (0, 0)),      # norm gamma
            pl.BlockSpec((1, DS), lambda h: (0, 0)),      # norm beta
            pl.BlockSpec((DS, DS), lambda h: (0, h)),     # wq column tile
            pl.BlockSpec((DS, DS), lambda h: (0, h)),     # wk column tile
            pl.BlockSpec((DS, DS), lambda h: (0, h)),     # wv column tile
            pl.BlockSpec((DS, DS), lambda h: (h, 0)),     # wo row tile
        ],
        out_specs=pl.BlockSpec((1, T1, DS), lambda h: (h, 0, 0)),
        compiler_params=_cparams("parallel"),
    )(query, kv, norm_g, norm_b, p["wq"], p["wk"], p["wv"], p["wo"])
    return jnp.sum(partials, axis=0) + p["bo"]


def gated_attention(p, norm_g, norm_b, h):
    N, D = h.shape
    m, a = pl.pallas_call(
        _gated_attn_kernel,
        out_shape=(jax.ShapeDtypeStruct((1, D), jnp.float32),
                   jax.ShapeDtypeStruct((1, N), jnp.float32)),
        in_specs=[_VMEM] * 9,
        out_specs=(_VMEM, _VMEM),
        compiler_params=_cparams(),
    )(h, norm_g, norm_b, p["wv"], p["bv"], p["wu"], p["bu"], p["ww"], p["bw"])
    return m, a


def fusion_classifier(p, wsi_feat, text_feat):
    x = jnp.concatenate([wsi_feat, text_feat], axis=-1)           # (1, 1024)
    n_classes = p["classifier_w"].shape[1]
    f, logits = pl.pallas_call(
        _fusion_cls_kernel,
        out_shape=(jax.ShapeDtypeStruct((1, DS), jnp.float32),
                   jax.ShapeDtypeStruct((1, n_classes), jnp.float32)),
        in_specs=[_VMEM] * 5,
        out_specs=(_VMEM, _VMEM),
        compiler_params=_cparams(),
    )(x, p["fc_fusion_w"], p["fc_fusion_b"],
      p["classifier_w"], p["classifier_b"])
    return f, logits


def contrastive_learning(logit_scale, orig_list, recon_list, a_vec, b_vec,
                         label, n_classes):
    if label != n_classes - 1:
        o = jnp.concatenate([orig_list[:label], orig_list[label + 1:]], axis=0)
        r = jnp.concatenate([recon_list[:label], recon_list[label + 1:]], axis=0)
    else:
        o = orig_list[:label]
        r = recon_list[:label]
    o = jnp.concatenate([o.reshape(-1, DS), a_vec], axis=0)
    r = jnp.concatenate([r.reshape(-1, DS), b_vec], axis=0)
    M = o.shape[0]
    scale = jnp.exp(logit_scale).reshape(1, 1).astype(jnp.float32)
    po, pr = pl.pallas_call(
        _contrastive_kernel,
        out_shape=(jax.ShapeDtypeStruct((1, M), jnp.float32),
                   jax.ShapeDtypeStruct((1, M), jnp.float32)),
        in_specs=[_VMEM] * 3,
        out_specs=(_VMEM, _VMEM),
        compiler_params=_cparams(),
    )(o, r, scale)
    return po.reshape(-1), pr.reshape(-1), M


# ----------------------------------------------------------------------------
# Parameter / buffer init (deterministic, synthetic)
# ----------------------------------------------------------------------------
def _lin_init(key, din, dout, bias=True, scale=0.02, dtype=jnp.float32):
    kw, kb = jax.random.split(key)
    w = (scale * jax.random.normal(kw, (din, dout), jnp.float32)).astype(dtype)
    b = scale * jax.random.normal(kb, (1, dout), jnp.float32) if bias else None
    return w, b


def init_rcrl(key, n_classes, max_length):
    ks = iter(jax.random.split(key, 64))
    nxt = lambda: next(ks)
    p = {}
    p["fc_image_w"], p["fc_image_b"] = _lin_init(nxt(), DS, DS)
    p["fc_histo_w"], p["fc_histo_b"] = _lin_init(nxt(), DS, DS)
    p["fc_histo_tokens_w"], p["fc_histo_tokens_b"] = _lin_init(nxt(), TOK_DIM, DS)
    p["fc_gene_w"], p["fc_gene_b"] = _lin_init(nxt(), DS, DS)
    p["fc_fusion_w"], p["fc_fusion_b"] = _lin_init(nxt(), 2 * DS, DS)
    p["classifier_w"], p["classifier_b"] = _lin_init(nxt(), DS, n_classes)
    p["norm_g"] = jnp.ones((1, DS), jnp.float32)
    p["norm_b"] = jnp.zeros((1, DS), jnp.float32)

    p["conv"] = {
        "w7": 0.02 * jax.random.normal(nxt(), (7, DS), jnp.float32),
        "b7": 0.02 * jax.random.normal(nxt(), (DS,), jnp.float32),
        "w5": 0.02 * jax.random.normal(nxt(), (5, DS), jnp.float32),
        "b5": 0.02 * jax.random.normal(nxt(), (DS,), jnp.float32),
        "w3": 0.02 * jax.random.normal(nxt(), (3, DS), jnp.float32),
        "b3": 0.02 * jax.random.normal(nxt(), (DS,), jnp.float32),
    }

    def trans_layer_params():
        wq, _ = _lin_init(nxt(), DS, DS, bias=False)
        wk, _ = _lin_init(nxt(), DS, DS, bias=False)
        wv, _ = _lin_init(nxt(), DS, DS, bias=False)
        wo, bo = _lin_init(nxt(), DS, DS)
        return {
            "ln_g": jnp.ones((1, DS), jnp.float32),
            "ln_b": jnp.zeros((1, DS), jnp.float32),
            "wqkv": jnp.concatenate([wq, wk, wv], axis=1).astype(jnp.bfloat16),
            "wo": wo.astype(jnp.bfloat16),
            "bo": bo,
        }

    p["layer1"] = trans_layer_params()
    p["layer2"] = trans_layer_params()

    cross = {}
    cross["wq"], _ = _lin_init(nxt(), DS, DS * N_HEADS, bias=False,
                               dtype=jnp.bfloat16)
    cross["wk"], _ = _lin_init(nxt(), DS, DS * N_HEADS, bias=False,
                               dtype=jnp.bfloat16)
    cross["wv"], _ = _lin_init(nxt(), DS, DS * N_HEADS, bias=False,
                               dtype=jnp.bfloat16)
    wo, bo = _lin_init(nxt(), DS * N_HEADS, DS)
    cross["wo"] = wo.astype(jnp.bfloat16)
    cross["bo"] = bo
    p["cross"] = cross

    def ga_params():
        d = {}
        d["wv"], d["bv"] = _lin_init(nxt(), DS, GA_D)
        d["wu"], d["bu"] = _lin_init(nxt(), DS, GA_D)
        ww, bw = _lin_init(nxt(), GA_D, 1)
        d["ww"] = ww.reshape(1, GA_D)        # lane-dense row
        d["bw"] = bw.reshape(1, 1)
        return d

    p["ga_wsi"] = ga_params()
    p["ga_text"] = ga_params()

    p["logit_scale1"] = jnp.float32(math.log(1.0 / 0.07))
    p["logit_scale2"] = jnp.float32(math.log(1.0 / 0.07))

    buffers = {
        "sequence_embedd_list": jax.random.normal(nxt(), (n_classes, max_length, DS), jnp.float32),
        "fusion_embedd_list": jax.random.normal(nxt(), (n_classes, max_length, DS), jnp.float32),
        "original_histo_embedd_list": jax.random.normal(nxt(), (n_classes, max_length, DS), jnp.float32),
        "reconstruct_histo_embedd_list": jax.random.normal(nxt(), (n_classes, max_length, DS), jnp.float32),
    }
    return p, buffers


# ----------------------------------------------------------------------------
# RCRL forward (batch = 1)
# ----------------------------------------------------------------------------
def rcrl_forward(p, buffers, image, histo, histo_tokens, sequence, label,
                 n_classes):
    Np = image.shape[1]
    T = histo_tokens.shape[1]

    image_f = linear(image.reshape(Np, DS), p["fc_image_w"], p["fc_image_b"], relu=True)
    histo_f = linear(histo, p["fc_histo_w"], p["fc_histo_b"], relu=True)
    tokens_f = linear(histo_tokens.reshape(T, TOK_DIM),
                      p["fc_histo_tokens_w"], p["fc_histo_tokens_b"], relu=True)
    seq_f = linear(sequence, p["fc_gene_w"], p["fc_gene_b"], relu=True)

    conv_input = trans_layer(p["layer1"], image_f)
    conv_output = conv_layer(p["conv"], conv_input)
    image_output = trans_layer(p["layer2"], conv_output)

    # LN of query / kv is fused into the cross-attention kernel.
    ca_output = cross_attention(p["cross"], p["norm_g"], p["norm_b"],
                                tokens_f, image_f)
    # LN fused into gated-attention kernels.
    histo_reconstruct_feat, _ = gated_attention(
        p["ga_text"], p["norm_g"], p["norm_b"], ca_output)
    WSI_feat, A = gated_attention(
        p["ga_wsi"], p["norm_g"], p["norm_b"], image_output)

    fusion_feat, logits = fusion_classifier(p, WSI_feat, histo_reconstruct_feat)

    original_probs, reconstruct_probs, length_reconstruct = contrastive_learning(
        p["logit_scale1"], buffers["original_histo_embedd_list"],
        buffers["reconstruct_histo_embedd_list"], histo_f,
        histo_reconstruct_feat, label, n_classes)

    new_buffers = dict(buffers)
    new_buffers["original_histo_embedd_list"] = buffers["original_histo_embedd_list"].at[label].set(
        jnp.concatenate([buffers["original_histo_embedd_list"][label, 1:], histo_f], axis=0))
    new_buffers["reconstruct_histo_embedd_list"] = buffers["reconstruct_histo_embedd_list"].at[label].set(
        jnp.concatenate([buffers["reconstruct_histo_embedd_list"][label, 1:], histo_reconstruct_feat], axis=0))

    Y_hat = jnp.argmax(logits, axis=1)
    Y_prob = jax.nn.softmax(logits, axis=1)

    fusion_probs, sequence_probs, length_sequence = contrastive_learning(
        p["logit_scale2"], buffers["fusion_embedd_list"],
        buffers["sequence_embedd_list"], fusion_feat, seq_f, label, n_classes)

    new_buffers["fusion_embedd_list"] = buffers["fusion_embedd_list"].at[label].set(
        jnp.concatenate([buffers["fusion_embedd_list"][label, 1:], fusion_feat], axis=0))
    new_buffers["sequence_embedd_list"] = buffers["sequence_embedd_list"].at[label].set(
        jnp.concatenate([buffers["sequence_embedd_list"][label, 1:], seq_f], axis=0))

    results_dict = {
        "logits": logits, "Y_prob": Y_prob, "Y_hat": Y_hat,
        "feature": fusion_feat,
        "fusion_probs": fusion_probs, "sequence_probs": sequence_probs,
        "length_sequence": length_sequence,
        "original_probs": original_probs, "reconstruct_probs": reconstruct_probs,
        "length_reconstruct": length_reconstruct,
    }
    return results_dict, new_buffers


# ----------------------------------------------------------------------------
if __name__ == "__main__":
    n_classes, max_length = 4, 4
    Np, T = 16, 8            # number of image patches / histo tokens
    label = 1                # static python int, as in the PyTorch code path

    params, buffers = init_rcrl(jax.random.PRNGKey(0), n_classes, max_length)

    k1, k2, k3, k4 = jax.random.split(jax.random.PRNGKey(0), 4)
    image = jax.random.normal(k1, (1, Np, DS), jnp.float32)
    histo = jax.random.normal(k2, (1, DS), jnp.float32)
    histo_tokens = jax.random.normal(k3, (1, T, TOK_DIM), jnp.float32)
    sequence = jax.random.normal(k4, (1, DS), jnp.float32)

    results, new_buffers = rcrl_forward(params, buffers, image, histo,
                                        histo_tokens, sequence, label,
                                        n_classes)
    jax.block_until_ready(results)
    jax.block_until_ready(new_buffers)
    print("KERNEL_OK")
</pallas_src>

<mosaic_0001>
module attributes {stable_mosaic.version = 11 : i64} {
  func.func @_linear_kernel(%arg0: memref<16x512xf32, #tpu.memory_space<vmem>>, %arg1: memref<512x512xf32, #tpu.memory_space<vmem>>, %arg2: memref<1x512xf32, #tpu.memory_space<vmem>>, %arg3: memref<16x512xf32, #tpu.memory_space<vmem>>) attributes {dimension_semantics = [], scalar_prefetch = 0 : i64, scratch_operands = 0 : i64, tpu.core_type = #tpu.core_type<tc>} {
    %c0 = arith.constant 0 : index
    %c0_0 = arith.constant 0 : index
    %0 = vector.load %arg0[%c0, %c0_0] : memref<16x512xf32, #tpu.memory_space<vmem>>, vector<16x512xf32>
    %c0_1 = arith.constant 0 : index
    %c0_2 = arith.constant 0 : index
    %1 = vector.load %arg1[%c0_1, %c0_2] : memref<512x512xf32, #tpu.memory_space<vmem>>, vector<512x512xf32>
    %cst = arith.constant dense<0.000000e+00> : vector<16x512xf32>
    %2 = tpu.matmul %0, %1, %cst {dimension_numbers = #tpu.dot_dimension_numbers<[1], [0], [0], [1], [0, 0, 1, 1], [], []>} : vector<16x512xf32>, vector<512x512xf32>, vector<16x512xf32> -> vector<16x512xf32>
    %c0_3 = arith.constant 0 : index
    %c0_4 = arith.constant 0 : index
    %3 = vector.load %arg2[%c0_3, %c0_4] : memref<1x512xf32, #tpu.memory_space<vmem>>, vector<1x512xf32>
    %4 = vector.broadcast %3 : vector<1x512xf32> to vector<16x512xf32>
    %5 = arith.addf %2, %4 : vector<16x512xf32>
    %cst_5 = arith.constant 0.000000e+00 : f32
    %6 = vector.broadcast %cst_5 : f32 to vector<16x512xf32>
    %7 = arith.maximumf %5, %6 : vector<16x512xf32>
    %c0_6 = arith.constant 0 : index
    %c0_7 = arith.constant 0 : index
    %8 = vector.load %arg3[%c0_6, %c0_7] : memref<16x512xf32, #tpu.memory_space<vmem>>, vector<16x512xf32>
    tpu.vector_store %arg3[%c0_6, %c0_7], %7 {strides = array<i32>} : memref<16x512xf32, #tpu.memory_space<vmem>>, vector<16x512xf32>,
    return
  }
}

</mosaic_0001>

<llo_original>
// kernel: tpu_custom_call.1
$region0: #{tpu_custom_call.1}
  #allocation0 [shape = 'u32[]', space=smem, size = 0x4, offset = 0x4, fixed_abs, tag = 'smem constant byte address 0x4 - core index']
  #allocation1 [shape = 'u32[72,128]{1,0:T(1,128)}', space=vmem, size = 0x9000, scoped, tag = 'internal scratch']
  %s0 = inlined_call_operand.hbm [shape: f32[16,512], index: 0, kind: input, shape index: {}]
  %s1 = inlined_call_operand.hbm [shape: f32[512,512], index: 1, kind: input, shape index: {}]
  %s2 = inlined_call_operand.hbm [shape: f32[1,512], index: 2, kind: input, shape index: {}]
  %s3 = inlined_call_operand.hbm [shape: f32[16,512], index: 3, kind: output, shape index: {}]
  %s4 = sld [smem:[#allocation0]]
  $region34: #{tpu_custom_call.1} parent=0
    _
  %s6 = ssub.s32 1, %s4
  %s7 = scalar_select 0, %s6, %s4
  $region1: #{tpu_custom_call.1} parent=0
    #allocation2 [shape = 'u8[32768]{0}', space=vmem, size = 0x8000, scoped, tag = 'input window, operand 0, single buffered']
    #allocation3 [shape = 's32[1]{0}', space=sflag, size = 0x4, scoped, tag = 'scoped memory for tpu_custom_call.1']
    #allocation4 [shape = 's32[1]{0}', space=sflag, size = 0x4, scoped, tag = 'scoped memory for tpu_custom_call.1']
    #allocation5 [shape = 'u8[1048576]{0}', space=vmem, size = 0x100000, scoped, tag = 'input window, operand 1, single buffered']
    #allocation6 [shape = 's32[1]{0}', space=sflag, size = 0x4, scoped, tag = 'scoped memory for tpu_custom_call.1']
    #allocation7 [shape = 'u8[2048]{0}', space=vmem, size = 0x800, scoped, tag = 'input window, operand 2, single buffered']
    #allocation8 [shape = 'u8[32768]{0}', space=vmem, size = 0x8000, scoped, tag = 'output window, operand 0, single buffered']
    %8 = vsyncpa [#allocation3], 0
    %9 = vsyncpa [#allocation6], 0
    %10 = vsyncpa [#allocation4], 0
    // Predicated region
    $region2: #{tpu_custom_call.1} parent=1 // pred_check
      _
    $region3: #{tpu_custom_call.1} parent=1 // pred_check_branch
      %12 = sbr.rel (0) target = $region5
    $region4: #{tpu_custom_call.1} parent=1 // pred_region
      %14 = vsyncadd [#allocation3], 0
      %s15 = sshll.u32 %s0, 4
      %s16 = int_to_ptr.hbm [resolvable:$true] %s15
      %s17 = sshll.u32 [#allocation2], 4
      %s18 = int_to_ptr.vmem [resolvable:$true] %s17
      %23 = dma.hbm_to_vmem [thread:$0]  %s16, 1024, %s18, [#allocation3], 512, 512, 32
    $region5: #{tpu_custom_call.1} parent=1 // pred_fallthru
      _
    // Predicated region
    $region6: #{tpu_custom_call.1} parent=1 // pred_check
      _
    $region7: #{tpu_custom_call.1} parent=1 // pred_check_branch
      %25 = sbr.rel (0) target = $region9
    $region8: #{tpu_custom_call.1} parent=1 // pred_region
      %27 = vsyncadd [#allocation6], 0
      %s28 = sshll.u32 %s1, 4
      %s29 = int_to_ptr.hbm [resolvable:$true] %s28
      %s30 = sshll.u32 [#allocation5], 4
      %s31 = int_to_ptr.vmem [resolvable:$true] %s30
      %36 = dma.hbm_to_vmem [thread:$0]  %s29, 32768, %s31, [#allocation6], 512, 512, 32
    $region9: #{tpu_custom_call.1} parent=1 // pred_fallthru
      _
    // Predicated region
    $region10: #{tpu_custom_call.1} parent=1 // pred_check
      _
    $region11: #{tpu_custom_call.1} parent=1 // pred_check_branch
      %38 = sbr.rel (0) target = $region13
    $region12: #{tpu_custom_call.1} parent=1 // pred_region
      %40 = vsyncadd [#allocation6], 0
      %s42 = sshll.u32 %s2, 4
      %s43 = int_to_ptr.hbm [resolvable:$true] %s42
      %s44 = sshll.u32 [#allocation7], 4
      %s45 = int_to_ptr.vmem [resolvable:$true] %s44
      %47 = dma.hbm_to_vmem [thread:$0]  %s43, 64, %s45, [#allocation6]
    $region13: #{tpu_custom_call.1} parent=1 // pred_fallthru
      _
    // Predicated region
    $region14: #{tpu_custom_call.1} parent=1 // pred_check
      _
    $region15: #{tpu_custom_call.1} parent=1 // pred_check_branch
      %49 = sbr.rel (0) target = $region17
    $region16: #{tpu_custom_call.1} parent=1 // pred_region
      %51 = dma.done [#allocation3], 1024
    $region17: #{tpu_custom_call.1} parent=1 // pred_fallthru
      _
    // Predicated region
    $region18: #{tpu_custom_call.1} parent=1 // pred_check
      _
    $region19: #{tpu_custom_call.1} parent=1 // pred_check_branch
      %53 = sbr.rel (0) target = $region21
    $region20: #{tpu_custom_call.1} parent=1 // pred_region
      %55 = dma.done [#allocation6], 32768
    $region21: #{tpu_custom_call.1} parent=1 // pred_fallthru
      _
    // Predicated region
    $region22: #{tpu_custom_call.1} parent=1 // pred_check
      _
    $region23: #{tpu_custom_call.1} parent=1 // pred_check_branch
      %57 = sbr.rel (0) target = $region25
    $region24: #{tpu_custom_call.1} parent=1 // pred_region
      %59 = dma.done [#allocation6], 64
    $region25: #{tpu_custom_call.1} parent=1 // pred_fallthru
      _
    %v60 = vld [vmem:[#allocation2] sm:$0xff]
    %v61 = vld [vmem:[#allocation2 + $0x8] sm:$0xff]
    %v62 = vld [vmem:[#allocation2 + $0x10] sm:$0xff]
    %v63 = vld [vmem:[#allocation2 + $0x18] sm:$0xff]
    %v64 = vld [vmem:[#allocation2 + $0x20] sm:$0xff]
    %v65 = vld [vmem:[#allocation2 + $0x28] sm:$0xff]
    %v66 = vld [vmem:[#allocation2 + $0x30] sm:$0xff]
    %v67 = vld [vmem:[#allocation2 + $0x38] sm:$0xff]
    %v68 = vld [vmem:[#allocation5] sm:$0xff]
    %v69 = vld [vmem:[#allocation5 + $0x8] sm:$0xff]
    %v70 = vld [vmem:[#allocation5 + $0x10] sm:$0xff]
    %v71 = vld [vmem:[#allocation5 + $0x18] sm:$0xff]
    %v72 = vld [vmem:[#allocation5 + $0x20] sm:$0xff]
    %v73 = vld [vmem:[#allocation5 + $0x28] sm:$0xff]
    %v74 = vld [vmem:[#allocation5 + $0x30] sm:$0xff]
    %v75 = vld [vmem:[#allocation5 + $0x38] sm:$0xff]
    %v76 = vld [vmem:[#allocation5 + $0x40] sm:$0xff]
    %v77 = vld [vmem:[#allocation5 + $0x48] sm:$0xff]
    %v78 = vld [vmem:[#allocation5 + $0x50] sm:$0xff]
    %v79 = vld [vmem:[#allocation5 + $0x58] sm:$0xff]
    %v80 = vld [vmem:[#allocation5 + $0x60] sm:$0xff]
    %v81 = vld [vmem:[#allocation5 + $0x68] sm:$0xff]
    %v82 = vld [vmem:[#allocation5 + $0x70] sm:$0xff]
    %v83 = vld [vmem:[#allocation5 + $0x78] sm:$0xff]
    %v84 = vld [vmem:[#allocation5 + $0x80] sm:$0xff]
    %v85 = vld [vmem:[#allocation5 + $0x88] sm:$0xff]
    %v86 = vld [vmem:[#allocation5 + $0x90] sm:$0xff]
    %v87 = vld [vmem:[#allocation5 + $0x98] sm:$0xff]
    %v88 = vld [vmem:[#allocation5 + $0xa0] sm:$0xff]
    %v89 = vld [vmem:[#allocation5 + $0xa8] sm:$0xff]
    %v90 = vld [vmem:[#allocation5 + $0xb0] sm:$0xff]
    %v91 = vld [vmem:[#allocation5 + $0xb8] sm:$0xff]
    %v92 = vld [vmem:[#allocation5 + $0xc0] sm:$0xff]
    %v93 = vld [vmem:[#allocation5 + $0xc8] sm:$0xff]
    %v94 = vld [vmem:[#allocation5 + $0xd0] sm:$0xff]
    %v95 = vld [vmem:[#allocation5 + $0xd8] sm:$0xff]
    %v96 = vld [vmem:[#allocation5 + $0xe0] sm:$0xff]
    %v97 = vld [vmem:[#allocation5 + $0xe8] sm:$0xff]
    %v98 = vld [vmem:[#allocation5 + $0xf0] sm:$0xff]
    %v99 = vld [vmem:[#allocation5 + $0xf8] sm:$0xff]
    %v100 = vld [vmem:[#allocation5 + $0x100] sm:$0xff]
    %v101 = vld [vmem:[#allocation5 + $0x108] sm:$0xff]
    %v102 = vld [vmem:[#allocation5 + $0x110] sm:$0xff]
    %v103 = vld [vmem:[#allocation5 + $0x118] sm:$0xff]
    %v104 = vld [vmem:[#allocation5 + $0x120] sm:$0xff]
    %v105 = vld [vmem:[#allocation5 + $0x128] sm:$0xff]
    %v106 = vld [vmem:[#allocation5 + $0x130] sm:$0xff]
    %v107 = vld [vmem:[#allocation5 + $0x138] sm:$0xff]
    %v108 = vld [vmem:[#allocation5 + $0x140] sm:$0xff]
    %v109 = vld [vmem:[#allocation5 + $0x148] sm:$0xff]
    %v110 = vld [vmem:[#allocation5 + $0x150] sm:$0xff]
    %v111 = vld [vmem:[#allocation5 + $0x158] sm:$0xff]
    %v112 = vld [vmem:[#allocation5 + $0x160] sm:$0xff]
    %v113 = vld [vmem:[#allocation5 + $0x168] sm:$0xff]
    %v114 = vld [vmem:[#allocation5 + $0x170] sm:$0xff]
    %v115 = vld [vmem:[#allocation5 + $0x178] sm:$0xff]
    %v116 = vld [vmem:[#allocation5 + $0x180] sm:$0xff]
    %v117 = vld [vmem:[#allocation5 + $0x188] sm:$0xff]
    %v118 = vld [vmem:[#allocation5 + $0x190] sm:$0xff]
    %v119 = vld [vmem:[#allocation5 + $0x198] sm:$0xff]
    %v120 = vld [vmem:[#allocation5 + $0x1a0] sm:$0xff]
    %v121 = vld [vmem:[#allocation5 + $0x1a8] sm:$0xff]
    %v122 = vld [vmem:[#allocation5 + $0x1b0] sm:$0xff]
    %v123 = vld [vmem:[#allocation5 + $0x1b8] sm:$0xff]
    %v124 = vld [vmem:[#allocation5 + $0x1c0] sm:$0xff]
    %v125 = vld [vmem:[#allocation5 + $0x1c8] sm:$0xff]
    %v126 = vld [vmem:[#allocation5 + $0x1d0] sm:$0xff]
    %v127 = vld [vmem:[#allocation5 + $0x1d8] sm:$0xff]
    %v128 = vld [vmem:[#allocation5 + $0x1e0] sm:$0xff]
    %v129 = vld [vmem:[#allocation5 + $0x1e8] sm:$0xff]
    %v130 = vld [vmem:[#allocation5 + $0x1f0] sm:$0xff]
    %v131 = vld [vmem:[#allocation5 + $0x1f8] sm:$0xff]
    %v132 = vld [vmem:[#allocation5 + $0x200] sm:$0xff]
    %v133 = vld [vmem:[#allocation5 + $0x208] sm:$0xff]
    %v134 = vld [vmem:[#allocation5 + $0x210] sm:$0xff]
    %v135 = vld [vmem:[#allocation5 + $0x218] sm:$0xff]
    %v136 = vld [vmem:[#allocation5 + $0x220] sm:$0xff]
    %v137 = vld [vmem:[#allocation5 + $0x228] sm:$0xff]
    %v138 = vld [vmem:[#allocation5 + $0x230] sm:$0xff]
    %v139 = vld [vmem:[#allocation5 + $0x238] sm:$0xff]
    %v140 = vld [vmem:[#allocation5 + $0x240] sm:$0xff]
    %v141 = vld [vmem:[#allocation5 + $0x248] sm:$0xff]
    %v142 = vld [vmem:[#allocation5 + $0x250] sm:$0xff]
    %v143 = vld [vmem:[#allocation5 + $0x258] sm:$0xff]
    %v144 = vld [vmem:[#allocation5 + $0x260] sm:$0xff]
    %v145 = vld [vmem:[#allocation5 + $0x268] sm:$0xff]
    %v146 = vld [vmem:[#allocation5 + $0x270] sm:$0xff]
    %v147 = vld [vmem:[#allocation5 + $0x278] sm:$0xff]
    %v148 = vld [vmem:[#allocation5 + $0x280] sm:$0xff]
    %v149 = vld [vmem:[#allocation5 + $0x288] sm:$0xff]
    %v150 = vld [vmem:[#allocation5 + $0x290] sm:$0xff]
    %v151 = vld [vmem:[#allocation5 + $0x298] sm:$0xff]
    %v152 = vld [vmem:[#allocation5 + $0x2a0] sm:$0xff]
    %v153 = vld [vmem:[#allocation5 + $0x2a8] sm:$0xff]
    %v154 = vld [vmem:[#allocation5 + $0x2b0] sm:$0xff]
    %v155 = vld [vmem:[#allocation5 + $0x2b8] sm:$0xff]
    %v156 = vld [vmem:[#allocation5 + $0x2c0] sm:$0xff]
    %v157 = vld [vmem:[#allocation5 + $0x2c8] sm:$0xff]
    %v158 = vld [vmem:[#allocation5 + $0x2d0] sm:$0xff]
    %v159 = vld [vmem:[#allocation5 + $0x2d8] sm:$0xff]
    %v160 = vld [vmem:[#allocation5 + $0x2e0] sm:$0xff]
    %v161 = vld [vmem:[#allocation5 + $0x2e8] sm:$0xff]
    %v162 = vld [vmem:[#allocation5 + $0x2f0] sm:$0xff]
    %v163 = vld [vmem:[#allocation5 + $0x2f8] sm:$0xff]
    %v164 = vld [vmem:[#allocation5 + $0x300] sm:$0xff]
    %v165 = vld [vmem:[#allocation5 + $0x308] sm:$0xff]
    %v166 = vld [vmem:[#allocation5 + $0x310] sm:$0xff]
    %v167 = vld [vmem:[#allocation5 + $0x318] sm:$0xff]
    %v168 = vld [vmem:[#allocation5 + $0x320] sm:$0xff]
    %v169 = vld [vmem:[#allocation5 + $0x328] sm:$0xff]
    %v170 = vld [vmem:[#allocation5 + $0x330] sm:$0xff]
    %v171 = vld [vmem:[#allocation5 + $0x338] sm:$0xff]
    %v172 = vld [vmem:[#allocation5 + $0x340] sm:$0xff]
    %v173 = vld [vmem:[#allocation5 + $0x348] sm:$0xff]
    %v174 = vld [vmem:[#allocation5 + $0x350] sm:$0xff]
    %v175 = vld [vmem:[#allocation5 + $0x358] sm:$0xff]
    %v176 = vld [vmem:[#allocation5 + $0x360] sm:$0xff]
    %v177 = vld [vmem:[#allocation5 + $0x368] sm:$0xff]
    %v178 = vld [vmem:[#allocation5 + $0x370] sm:$0xff]
    %v179 = vld [vmem:[#allocation5 + $0x378] sm:$0xff]
    %v180 = vld [vmem:[#allocation5 + $0x380] sm:$0xff]
    %v181 = vld [vmem:[#allocation5 + $0x388] sm:$0xff]
    %v182 = vld [vmem:[#allocation5 + $0x390] sm:$0xff]
    %v183 = vld [vmem:[#allocation5 + $0x398] sm:$0xff]
    %v184 = vld [vmem:[#allocation5 + $0x3a0] sm:$0xff]
    %v185 = vld [vmem:[#allocation5 + $0x3a8] sm:$0xff]
    %v186 = vld [vmem:[#allocation5 + $0x3b0] sm:$0xff]
    %v187 = vld [vmem:[#allocation5 + $0x3b8] sm:$0xff]
    %v188 = vld [vmem:[#allocation5 + $0x3c0] sm:$0xff]
    %v189 = vld [vmem:[#allocation5 + $0x3c8] sm:$0xff]
    %v190 = vld [vmem:[#allocation5 + $0x3d0] sm:$0xff]
    %v191 = vld [vmem:[#allocation5 + $0x3d8] sm:$0xff]
    %v192 = vld [vmem:[#allocation5 + $0x3e0] sm:$0xff]
    %v193 = vld [vmem:[#allocation5 + $0x3e8] sm:$0xff]
    %v194 = vld [vmem:[#allocation5 + $0x3f0] sm:$0xff]
    %v195 = vld [vmem:[#allocation5 + $0x3f8] sm:$0xff]
    %v196 = vld [vmem:[#allocation5 + $0x400] sm:$0xff]
    %v197 = vld [vmem:[#allocation5 + $0x408] sm:$0xff]
    %v198 = vld [vmem:[#allocation5 + $0x410] sm:$0xff]
    %v199 = vld [vmem:[#allocation5 + $0x418] sm:$0xff]
    %v200 = vld [vmem:[#allocation5 + $0x420] sm:$0xff]
    %v201 = vld [vmem:[#allocation5 + $0x428] sm:$0xff]
    %v202 = vld [vmem:[#allocation5 + $0x430] sm:$0xff]
    %v203 = vld [vmem:[#allocation5 + $0x438] sm:$0xff]
    %v204 = vld [vmem:[#allocation5 + $0x440] sm:$0xff]
    %v205 = vld [vmem:[#allocation5 + $0x448] sm:$0xff]
    %v206 = vld [vmem:[#allocation5 + $0x450] sm:$0xff]
    %v207 = vld [vmem:[#allocation5 + $0x458] sm:$0xff]
    %v208 = vld [vmem:[#allocation5 + $0x460] sm:$0xff]
    %v209 = vld [vmem:[#allocation5 + $0x468] sm:$0xff]
    %v210 = vld [vmem:[#allocation5 + $0x470] sm:$0xff]
    %v211 = vld [vmem:[#allocation5 + $0x478] sm:$0xff]
    %v212 = vld [vmem:[#allocation5 + $0x480] sm:$0xff]
    %v213 = vld [vmem:[#allocation5 + $0x488] sm:$0xff]
    %v214 = vld [vmem:[#allocation5 + $0x490] sm:$0xff]
    %v215 = vld [vmem:[#allocation5 + $0x498] sm:$0xff]
    %v216 = vld [vmem:[#allocation5 + $0x4a0] sm:$0xff]
    %v217 = vld [vmem:[#allocation5 + $0x4a8] sm:$0xff]
    %v218 = vld [vmem:[#allocation5 + $0x4b0] sm:$0xff]
    %v219 = vld [vmem:[#allocation5 + $0x4b8] sm:$0xff]
    %v220 = vld [vmem:[#allocation5 + $0x4c0] sm:$0xff]
    %v221 = vld [vmem:[#allocation5 + $0x4c8] sm:$0xff]
    %v222 = vld [vmem:[#allocation5 + $0x4d0] sm:$0xff]
    %v223 = vld [vmem:[#allocation5 + $0x4d8] sm:$0xff]
    %v224 = vld [vmem:[#allocation5 + $0x4e0] sm:$0xff]
    %v225 = vld [vmem:[#allocation5 + $0x4e8] sm:$0xff]
    %v226 = vld [vmem:[#allocation5 + $0x4f0] sm:$0xff]
    %v227 = vld [vmem:[#allocation5 + $0x4f8] sm:$0xff]
    %v228 = vld [vmem:[#allocation5 + $0x500] sm:$0xff]
    %v229 = vld [vmem:[#allocation5 + $0x508] sm:$0xff]
    %v230 = vld [vmem:[#allocation5 + $0x510] sm:$0xff]
    %v231 = vld [vmem:[#allocation5 + $0x518] sm:$0xff]
    %v232 = vld [vmem:[#allocation5 + $0x520] sm:$0xff]
    %v233 = vld [vmem:[#allocation5 + $0x528] sm:$0xff]
    %v234 = vld [vmem:[#allocation5 + $0x530] sm:$0xff]
    %v235 = vld [vmem:[#allocation5 + $0x538] sm:$0xff]
    %v236 = vld [vmem:[#allocation5 + $0x540] sm:$0xff]
    %v237 = vld [vmem:[#allocation5 + $0x548] sm:$0xff]
    %v238 = vld [vmem:[#allocation5 + $0x550] sm:$0xff]
    %v239 = vld [vmem:[#allocation5 + $0x558] sm:$0xff]
    %v240 = vld [vmem:[#allocation5 + $0x560] sm:$0xff]
    %v241 = vld [vmem:[#allocation5 + $0x568] sm:$0xff]
    %v242 = vld [vmem:[#allocation5 + $0x570] sm:$0xff]
    %v243 = vld [vmem:[#allocation5 + $0x578] sm:$0xff]
    %v244 = vld [vmem:[#allocation5 + $0x580] sm:$0xff]
    %v245 = vld [vmem:[#allocation5 + $0x588] sm:$0xff]
    %v246 = vld [vmem:[#allocation5 + $0x590] sm:$0xff]
    %v247 = vld [vmem:[#allocation5 + $0x598] sm:$0xff]
    %v248 = vld [vmem:[#allocation5 + $0x5a0] sm:$0xff]
    %v249 = vld [vmem:[#allocation5 + $0x5a8] sm:$0xff]
    %v250 = vld [vmem:[#allocation5 + $0x5b0] sm:$0xff]
    %v251 = vld [vmem:[#allocation5 + $0x5b8] sm:$0xff]
    %v252 = vld [vmem:[#allocation5 + $0x5c0] sm:$0xff]
    %v253 = vld [vmem:[#allocation5 + $0x5c8] sm:$0xff]
    %v254 = vld [vmem:[#allocation5 + $0x5d0] sm:$0xff]
    %v255 = vld [vmem:[#allocation5 + $0x5d8] sm:$0xff]
    %v256 = vld [vmem:[#allocation5 + $0x5e0] sm:$0xff]
    %v257 = vld [vmem:[#allocation5 + $0x5e8] sm:$0xff]
    %v258 = vld [vmem:[#allocation5 + $0x5f0] sm:$0xff]
    %v259 = vld [vmem:[#allocation5 + $0x5f8] sm:$0xff]
    %v260 = vld [vmem:[#allocation5 + $0x600] sm:$0xff]
    %v261 = vld [vmem:[#allocation5 + $0x608] sm:$0xff]
    %v262 = vld [vmem:[#allocation5 + $0x610] sm:$0xff]
    %v263 = vld [vmem:[#allocation5 + $0x618] sm:$0xff]
    %v264 = vld [vmem:[#allocation5 + $0x620] sm:$0xff]
    %v265 = vld [vmem:[#allocation5 + $0x628] sm:$0xff]
    %v266 = vld [vmem:[#allocation5 + $0x630] sm:$0xff]
    %v267 = vld [vmem:[#allocation5 + $0x638] sm:$0xff]
    %v268 = vld [vmem:[#allocation5 + $0x640] sm:$0xff]
    %v269 = vld [vmem:[#allocation5 + $0x648] sm:$0xff]
    %v270 = vld [vmem:[#allocation5 + $0x650] sm:$0xff]
    %v271 = vld [vmem:[#allocation5 + $0x658] sm:$0xff]
    %v272 = vld [vmem:[#allocation5 + $0x660] sm:$0xff]
    %v273 = vld [vmem:[#allocation5 + $0x668] sm:$0xff]
    %v274 = vld [vmem:[#allocation5 + $0x670] sm:$0xff]
    %v275 = vld [vmem:[#allocation5 + $0x678] sm:$0xff]
    %v276 = vld [vmem:[#allocation5 + $0x680] sm:$0xff]
    %v277 = vld [vmem:[#allocation5 + $0x688] sm:$0xff]
    %v278 = vld [vmem:[#allocation5 + $0x690] sm:$0xff]
    %v279 = vld [vmem:[#allocation5 + $0x698] sm:$0xff]
    %v280 = vld [vmem:[#allocation5 + $0x6a0] sm:$0xff]
    %v281 = vld [vmem:[#allocation5 + $0x6a8] sm:$0xff]
    %v282 = vld [vmem:[#allocation5 + $0x6b0] sm:$0xff]
    %v283 = vld [vmem:[#allocation5 + $0x6b8] sm:$0xff]
    %v284 = vld [vmem:[#allocation5 + $0x6c0] sm:$0xff]
    %v285 = vld [vmem:[#allocation5 + $0x6c8] sm:$0xff]
    %v286 = vld [vmem:[#allocation5 + $0x6d0] sm:$0xff]
    %v287 = vld [vmem:[#allocation5 + $0x6d8] sm:$0xff]
    %v288 = vld [vmem:[#allocation5 + $0x6e0] sm:$0xff]
    %v289 = vld [vmem:[#allocation5 + $0x6e8] sm:$0xff]
    %v290 = vld [vmem:[#allocation5 + $0x6f0] sm:$0xff]
    %v291 = vld [vmem:[#allocation5 + $0x6f8] sm:$0xff]
    %v292 = vld [vmem:[#allocation5 + $0x700] sm:$0xff]
    %v293 = vld [vmem:[#allocation5 + $0x708] sm:$0xff]
    %v294 = vld [vmem:[#allocation5 + $0x710] sm:$0xff]
    %v295 = vld [vmem:[#allocation5 + $0x718] sm:$0xff]
    %v296 = vld [vmem:[#allocation5 + $0x720] sm:$0xff]
    %v297 = vld [vmem:[#allocation5 + $0x728] sm:$0xff]
    %v298 = vld [vmem:[#allocation5 + $0x730] sm:$0xff]
    %v299 = vld [vmem:[#allocation5 + $0x738] sm:$0xff]
    %v300 = vld [vmem:[#allocation5 + $0x740] sm:$0xff]
    %v301 = vld [vmem:[#allocation5 + $0x748] sm:$0xff]
    %v302 = vld [vmem:[#allocation5 + $0x750] sm:$0xff]
    %v303 = vld [vmem:[#allocation5 + $0x758] sm:$0xff]
    %v304 = vld [vmem:[#allocation5 + $0x760] sm:$0xff]
    %v305 = vld [vmem:[#allocation5 + $0x768] sm:$0xff]
    %v306 = vld [vmem:[#allocation5 + $0x770] sm:$0xff]
    %v307 = vld [vmem:[#allocation5 + $0x778] sm:$0xff]
    %v308 = vld [vmem:[#allocation5 + $0x780] sm:$0xff]
    %v309 = vld [vmem:[#allocation5 + $0x788] sm:$0xff]
    %v310 = vld [vmem:[#allocation5 + $0x790] sm:$0xff]
    %v311 = vld [vmem:[#allocation5 + $0x798] sm:$0xff]
    %v312 = vld [vmem:[#allocation5 + $0x7a0] sm:$0xff]
    %v313 = vld [vmem:[#allocation5 + $0x7a8] sm:$0xff]
    %v314 = vld [vmem:[#allocation5 + $0x7b0] sm:$0xff]
    %v315 = vld [vmem:[#allocation5 + $0x7b8] sm:$0xff]
    %v316 = vld [vmem:[#allocation5 + $0x7c0] sm:$0xff]
    %v317 = vld [vmem:[#allocation5 + $0x7c8] sm:$0xff]
    %v318 = vld [vmem:[#allocation5 + $0x7d0] sm:$0xff]
    %v319 = vld [vmem:[#allocation5 + $0x7d8] sm:$0xff]
    %v320 = vld [vmem:[#allocation5 + $0x7e0] sm:$0xff]
    %v321 = vld [vmem:[#allocation5 + $0x7e8] sm:$0xff]
    %v322 = vld [vmem:[#allocation5 + $0x7f0] sm:$0xff]
    %v323 = vld [vmem:[#allocation5 + $0x7f8] sm:$0xff]
    %v324 = vld [vmem:[#allocation7] sm:$0xf]
    %v326 = vperm.slane %v324, 0
    %v327 = vperm.slane %v324, 1
    %v328 = vperm.slane %v324, 2
    %v329 = vperm.slane %v324, 3
    %334 = vmatpush.msra.mxu0 %v128
    %335 = vmatpush.msra.mxu0 %v124
    %336 = vmatpush.msra.mxu0 %v120
    %337 = vmatpush.msra.mxu0 %v116
    %338 = vmatpush.msra.mxu0 %v112
    %339 = vmatpush.msra.mxu0 %v108
    %340 = vmatpush.msra.mxu0 %v104
    %341 = vmatpush.msra.mxu0 %v100
    %342 = vmatpush.msra.mxu0 %v96
    %343 = vmatpush.msra.mxu0 %v92
    %344 = vmatpush.msra.mxu0 %v88
    %345 = vmatpush.msra.mxu0 %v84
    %346 = vmatpush.msra.mxu0 %v80
    %347 = vmatpush.msra.mxu0 %v76
    %348 = vmatpush.msra.mxu0 %v72
    %349 = vmatpush.msra.mxu0 %v68
    %350 = vmatmul.f32.gmra.mxu0 %v60
    %v351 = vpop.f32.mrf.mxu0
    %v352 = vadd.f32 %v326, %v351
    %353 = vmatmul.f32.gmra.mxu0 %v64
    %v354 = vpop.f32.mrf.mxu0
    %v355 = vadd.f32 %v326, %v354
    %356 = vdwg.mxu0
    %357 = vmatpush.msra.mxu0 %v192
    %358 = vmatpush.msra.mxu0 %v188
    %359 = vmatpush.msra.mxu0 %v184
    %360 = vmatpush.msra.mxu0 %v180
    %361 = vmatpush.msra.mxu0 %v176
    %362 = vmatpush.msra.mxu0 %v172
    %363 = vmatpush.msra.mxu0 %v168
    %364 = vmatpush.msra.mxu0 %v164
    %365 = vmatpush.msra.mxu0 %v160
    %366 = vmatpush.msra.mxu0 %v156
    %367 = vmatpush.msra.mxu0 %v152
    %368 = vmatpush.msra.mxu0 %v148
    %369 = vmatpush.msra.mxu0 %v144
    %370 = vmatpush.msra.mxu0 %v140
    %371 = vmatpush.msra.mxu0 %v136
    %372 = vmatpush.msra.mxu0 %v132
    %373 = vmatmul.f32.gmra.mxu0 %v61
    %v374 = vpop.f32.mrf.mxu0
    %v375 = vadd.f32 %v352, %v374
    %376 = vmatmul.f32.gmra.mxu0 %v65
    %v377 = vpop.f32.mrf.mxu0
    %v378 = vadd.f32 %v355, %v377
    %379 = vdwg.mxu0
    %380 = vmatpush.msra.mxu0 %v256
    %381 = vmatpush.msra.mxu0 %v252
    %382 = vmatpush.msra.mxu0 %v248
    %383 = vmatpush.msra.mxu0 %v244
    %384 = vmatpush.msra.mxu0 %v240
    %385 = vmatpush.msra.mxu0 %v236
    %386 = vmatpush.msra.mxu0 %v232
    %387 = vmatpush.msra.mxu0 %v228
    %388 = vmatpush.msra.mxu0 %v224
    %389 = vmatpush.msra.mxu0 %v220
    %390 = vmatpush.msra.mxu0 %v216
    %391 = vmatpush.msra.mxu0 %v212
    %392 = vmatpush.msra.mxu0 %v208
    %393 = vmatpush.msra.mxu0 %v204
    %394 = vmatpush.msra.mxu0 %v200
    %395 = vmatpush.msra.mxu0 %v196
    %396 = vmatmul.f32.gmra.mxu0 %v62
    %v397 = vpop.f32.mrf.mxu0
    %v398 = vadd.f32 %v375, %v397
    %399 = vmatmul.f32.gmra.mxu0 %v66
    %v400 = vpop.f32.mrf.mxu0
    %v401 = vadd.f32 %v378, %v400
    %402 = vdwg.mxu0
    %403 = vmatpush.msra.mxu0 %v320
    %404 = vmatpush.msra.mxu0 %v316
    %405 = vmatpush.msra.mxu0 %v312
    %406 = vmatpush.msra.mxu0 %v308
    %407 = vmatpush.msra.mxu0 %v304
    %408 = vmatpush.msra.mxu0 %v300
    %409 = vmatpush.msra.mxu0 %v296
    %410 = vmatpush.msra.mxu0 %v292
    %411 = vmatpush.msra.mxu0 %v288
    %412 = vmatpush.msra.mxu0 %v284
    %413 = vmatpush.msra.mxu0 %v280
    %414 = vmatpush.msra.mxu0 %v276
    %415 = vmatpush.msra.mxu0 %v272
    %416 = vmatpush.msra.mxu0 %v268
    %417 = vmatpush.msra.mxu0 %v264
    %418 = vmatpush.msra.mxu0 %v260
    %419 = vmatmul.f32.gmra.mxu0 %v63
    %v420 = vpop.f32.mrf.mxu0
    %v421 = vadd.f32 %v398, %v420
    %422 = vmatmul.f32.gmra.mxu0 %v67
    %v423 = vpop.f32.mrf.mxu0
    %v424 = vadd.f32 %v401, %v423
    %425 = vdwg.mxu0
    %426 = vmatpush.msra.mxu0 %v129
    %427 = vmatpush.msra.mxu0 %v125
    %428 = vmatpush.msra.mxu0 %v121
    %429 = vmatpush.msra.mxu0 %v117
    %430 = vmatpush.msra.mxu0 %v113
    %431 = vmatpush.msra.mxu0 %v109
    %432 = vmatpush.msra.mxu0 %v105
    %433 = vmatpush.msra.mxu0 %v101
    %434 = vmatpush.msra.mxu0 %v97
    %435 = vmatpush.msra.mxu0 %v93
    %436 = vmatpush.msra.mxu0 %v89
    %437 = vmatpush.msra.mxu0 %v85
    %438 = vmatpush.msra.mxu0 %v81
    %439 = vmatpush.msra.mxu0 %v77
    %440 = vmatpush.msra.mxu0 %v73
    %441 = vmatpush.msra.mxu0 %v69
    %442 = vmatmul.f32.gmra.mxu0 %v60
    %v443 = vpop.f32.mrf.mxu0
    %v444 = vadd.f32 %v327, %v443
    %445 = vmatmul.f32.gmra.mxu0 %v64
    %v446 = vpop.f32.mrf.mxu0
    %v447 = vadd.f32 %v327, %v446
    %448 = vdwg.mxu0
    %449 = vmatpush.msra.mxu0 %v193
    %450 = vmatpush.msra.mxu0 %v189
    %451 = vmatpush.msra.mxu0 %v185
    %452 = vmatpush.msra.mxu0 %v181
    %453 = vmatpush.msra.mxu0 %v177
    %454 = vmatpush.msra.mxu0 %v173
    %455 = vmatpush.msra.mxu0 %v169
    %456 = vmatpush.msra.mxu0 %v165
    %457 = vmatpush.msra.mxu0 %v161
    %458 = vmatpush.msra.mxu0 %v157
    %459 = vmatpush.msra.mxu0 %v153
    %460 = vmatpush.msra.mxu0 %v149
    %461 = vmatpush.msra.mxu0 %v145
    %462 = vmatpush.msra.mxu0 %v141
    %463 = vmatpush.msra.mxu0 %v137
    %464 = vmatpush.msra.mxu0 %v133
    %465 = vmatmul.f32.gmra.mxu0 %v61
    %v466 = vpop.f32.mrf.mxu0
    %v467 = vadd.f32 %v444, %v466
    %468 = vmatmul.f32.gmra.mxu0 %v65
    %v469 = vpop.f32.mrf.mxu0
    %v470 = vadd.f32 %v447, %v469
    %471 = vdwg.mxu0
    %472 = vmatpush.msra.mxu0 %v257
    %473 = vmatpush.msra.mxu0 %v253
    %474 = vmatpush.msra.mxu0 %v249
    %475 = vmatpush.msra.mxu0 %v245
    %476 = vmatpush.msra.mxu0 %v241
    %477 = vmatpush.msra.mxu0 %v237
    %478 = vmatpush.msra.mxu0 %v233
    %479 = vmatpush.msra.mxu0 %v229
    %480 = vmatpush.msra.mxu0 %v225
    %481 = vmatpush.msra.mxu0 %v221
    %482 = vmatpush.msra.mxu0 %v217
    %483 = vmatpush.msra.mxu0 %v213
    %484 = vmatpush.msra.mxu0 %v209
    %485 = vmatpush.msra.mxu0 %v205
    %486 = vmatpush.msra.mxu0 %v201
    %487 = vmatpush.msra.mxu0 %v197
    %488 = vmatmul.f32.gmra.mxu0 %v62
    %v489 = vpop.f32.mrf.mxu0
    %v490 = vadd.f32 %v467, %v489
    %491 = vmatmul.f32.gmra.mxu0 %v66
    %v492 = vpop.f32.mrf.mxu0
    %v493 = vadd.f32 %v470, %v492
    %494 = vdwg.mxu0
    %495 = vmatpush.msra.mxu0 %v321
    %496 = vmatpush.msra.mxu0 %v317
    %497 = vmatpush.msra.mxu0 %v313
    %498 = vmatpush.msra.mxu0 %v309
    %499 = vmatpush.msra.mxu0 %v305
    %500 = vmatpush.msra.mxu0 %v301
    %501 = vmatpush.msra.mxu0 %v297
    %502 = vmatpush.msra.mxu0 %v293
    %503 = vmatpush.msra.mxu0 %v289
    %504 = vmatpush.msra.mxu0 %v285
    %505 = vmatpush.msra.mxu0 %v281
    %506 = vmatpush.msra.mxu0 %v277
    %507 = vmatpush.msra.mxu0 %v273
    %508 = vmatpush.msra.mxu0 %v269
    %509 = vmatpush.msra.mxu0 %v265
    %510 = vmatpush.msra.mxu0 %v261
    %511 = vmatmul.f32.gmra.mxu0 %v63
    %v512 = vpop.f32.mrf.mxu0
    %v513 = vadd.f32 %v490, %v512
    %514 = vmatmul.f32.gmra.mxu0 %v67
    %v515 = vpop.f32.mrf.mxu0
    %v516 = vadd.f32 %v493, %v515
    %517 = vdwg.mxu0
    %518 = vmatpush.msra.mxu0 %v130
    %519 = vmatpush.msra.mxu0 %v126
    %520 = vmatpush.msra.mxu0 %v122
    %521 = vmatpush.msra.mxu0 %v118
    %522 = vmatpush.msra.mxu0 %v114
    %523 = vmatpush.msra.mxu0 %v110
    %524 = vmatpush.msra.mxu0 %v106
    %525 = vmatpush.msra.mxu0 %v102
    %526 = vmatpush.msra.mxu0 %v98
    %527 = vmatpush.msra.mxu0 %v94
    %528 = vmatpush.msra.mxu0 %v90
    %529 = vmatpush.msra.mxu0 %v86
    %530 = vmatpush.msra.mxu0 %v82
    %531 = vmatpush.msra.mxu0 %v78
    %532 = vmatpush.msra.mxu0 %v74
    %533 = vmatpush.msra.mxu0 %v70
    %534 = vmatmul.f32.gmra.mxu0 %v60
    %v535 = vpop.f32.mrf.mxu0
    %v536 = vadd.f32 %v328, %v535
    %537 = vmatmul.f32.gmra.mxu0 %v64
    %v538 = vpop.f32.mrf.mxu0
    %v539 = vadd.f32 %v328, %v538
    %540 = vdwg.mxu0
    %541 = vmatpush.msra.mxu0 %v194
    %542 = vmatpush.msra.mxu0 %v190
    %543 = vmatpush.msra.mxu0 %v186
    %544 = vmatpush.msra.mxu0 %v182
    %545 = vmatpush.msra.mxu0 %v178
    %546 = vmatpush.msra.mxu0 %v174
    %547 = vmatpush.msra.mxu0 %v170
    %548 = vmatpush.msra.mxu0 %v166
    %549 = vmatpush.msra.mxu0 %v162
    %550 = vmatpush.msra.mxu0 %v158
    %551 = vmatpush.msra.mxu0 %v154
    %552 = vmatpush.msra.mxu0 %v150
    %553 = vmatpush.msra.mxu0 %v146
    %554 = vmatpush.msra.mxu0 %v142
    %555 = vmatpush.msra.mxu0 %v138
    %556 = vmatpush.msra.mxu0 %v134
    %557 = vmatmul.f32.gmra.mxu0 %v61
    %v558 = vpop.f32.mrf.mxu0
    %v559 = vadd.f32 %v536, %v558
    %560 = vmatmul.f32.gmra.mxu0 %v65
    %v561 = vpop.f32.mrf.mxu0
    %v562 = vadd.f32 %v539, %v561
    %563 = vdwg.mxu0
    %564 = vmatpush.msra.mxu0 %v258
    %565 = vmatpush.msra.mxu0 %v254
    %566 = vmatpush.msra.mxu0 %v250
    %567 = vmatpush.msra.mxu0 %v246
    %568 = vmatpush.msra.mxu0 %v242
    %569 = vmatpush.msra.mxu0 %v238
    %570 = vmatpush.msra.mxu0 %v234
    %571 = vmatpush.msra.mxu0 %v230
    %572 = vmatpush.msra.mxu0 %v226
    %573 = vmatpush.msra.mxu0 %v222
    %574 = vmatpush.msra.mxu0 %v218
    %575 = vmatpush.msra.mxu0 %v214
    %576 = vmatpush.msra.mxu0 %v210
    %577 = vmatpush.msra.mxu0 %v206
    %578 = vmatpush.msra.mxu0 %v202
    %579 = vmatpush.msra.mxu0 %v198
    %580 = vmatmul.f32.gmra.mxu0 %v62
    %v581 = vpop.f32.mrf.mxu0
    %v582 = vadd.f32 %v559, %v581
    %583 = vmatmul.f32.gmra.mxu0 %v66
    %v584 = vpop.f32.mrf.mxu0
    %v585 = vadd.f32 %v562, %v584
    %586 = vdwg.mxu0
    %587 = vmatpush.msra.mxu0 %v322
    %588 = vmatpush.msra.mxu0 %v318
    %589 = vmatpush.msra.mxu0 %v314
    %590 = vmatpush.msra.mxu0 %v310
    %591 = vmatpush.msra.mxu0 %v306
    %592 = vmatpush.msra.mxu0 %v302
    %593 = vmatpush.msra.mxu0 %v298
    %594 = vmatpush.msra.mxu0 %v294
    %595 = vmatpush.msra.mxu0 %v290
    %596 = vmatpush.msra.mxu0 %v286
    %597 = vmatpush.msra.mxu0 %v282
    %598 = vmatpush.msra.mxu0 %v278
    %599 = vmatpush.msra.mxu0 %v274
    %600 = vmatpush.msra.mxu0 %v270
    %601 = vmatpush.msra.mxu0 %v266
    %602 = vmatpush.msra.mxu0 %v262
    %603 = vmatmul.f32.gmra.mxu0 %v63
    %v604 = vpop.f32.mrf.mxu0
    %v605 = vadd.f32 %v582, %v604
    %606 = vmatmul.f32.gmra.mxu0 %v67
    %v607 = vpop.f32.mrf.mxu0
    %v608 = vadd.f32 %v585, %v607
    %609 = vdwg.mxu0
    %610 = vmatpush.msra.mxu0 %v131
    %611 = vmatpush.msra.mxu0 %v127
    %612 = vmatpush.msra.mxu0 %v123
    %613 = vmatpush.msra.mxu0 %v119
    %614 = vmatpush.msra.mxu0 %v115
    %615 = vmatpush.msra.mxu0 %v111
    %616 = vmatpush.msra.mxu0 %v107
    %617 = vmatpush.msra.mxu0 %v103
    %618 = vmatpush.msra.mxu0 %v99
    %619 = vmatpush.msra.mxu0 %v95
    %620 = vmatpush.msra.mxu0 %v91
    %621 = vmatpush.msra.mxu0 %v87
    %622 = vmatpush.msra.mxu0 %v83
    %623 = vmatpush.msra.mxu0 %v79
    %624 = vmatpush.msra.mxu0 %v75
    %625 = vmatpush.msra.mxu0 %v71
    %626 = vmatmul.f32.gmra.mxu0 %v60
    %v627 = vpop.f32.mrf.mxu0
    %v628 = vadd.f32 %v329, %v627
    %629 = vmatmul.f32.gmra.mxu0 %v64
    %v630 = vpop.f32.mrf.mxu0
    %v631 = vadd.f32 %v329, %v630
    %632 = vdwg.mxu0
    %633 = vmatpush.msra.mxu0 %v195
    %634 = vmatpush.msra.mxu0 %v191
    %635 = vmatpush.msra.mxu0 %v187
    %636 = vmatpush.msra.mxu0 %v183
    %637 = vmatpush.msra.mxu0 %v179
    %638 = vmatpush.msra.mxu0 %v175
    %639 = vmatpush.msra.mxu0 %v171
    %640 = vmatpush.msra.mxu0 %v167
    %641 = vmatpush.msra.mxu0 %v163
    %642 = vmatpush.msra.mxu0 %v159
    %643 = vmatpush.msra.mxu0 %v155
    %644 = vmatpush.msra.mxu0 %v151
    %645 = vmatpush.msra.mxu0 %v147
    %646 = vmatpush.msra.mxu0 %v143
    %647 = vmatpush.msra.mxu0 %v139
    %648 = vmatpush.msra.mxu0 %v135
    %649 = vmatmul.f32.gmra.mxu0 %v61
    %v650 = vpop.f32.mrf.mxu0
    %v651 = vadd.f32 %v628, %v650
    %652 = vmatmul.f32.gmra.mxu0 %v65
    %v653 = vpop.f32.mrf.mxu0
    %v654 = vadd.f32 %v631, %v653
    %655 = vdwg.mxu0
    %656 = vmatpush.msra.mxu0 %v259
    %657 = vmatpush.msra.mxu0 %v255
    %658 = vmatpush.msra.mxu0 %v251
    %659 = vmatpush.msra.mxu0 %v247
    %660 = vmatpush.msra.mxu0 %v243
    %661 = vmatpush.msra.mxu0 %v239
    %662 = vmatpush.msra.mxu0 %v235
    %663 = vmatpush.msra.mxu0 %v231
    %664 = vmatpush.msra.mxu0 %v227
    %665 = vmatpush.msra.mxu0 %v223
    %666 = vmatpush.msra.mxu0 %v219
    %667 = vmatpush.msra.mxu0 %v215
    %668 = vmatpush.msra.mxu0 %v211
    %669 = vmatpush.msra.mxu0 %v207
    %670 = vmatpush.msra.mxu0 %v203
    %671 = vmatpush.msra.mxu0 %v199
    %672 = vmatmul.f32.gmra.mxu0 %v62
    %v673 = vpop.f32.mrf.mxu0
    %v674 = vadd.f32 %v651, %v673
    %675 = vmatmul.f32.gmra.mxu0 %v66
    %v676 = vpop.f32.mrf.mxu0
    %v677 = vadd.f32 %v654, %v676
    %678 = vdwg.mxu0
    %679 = vmatpush.msra.mxu0 %v323
    %680 = vmatpush.msra.mxu0 %v319
    %681 = vmatpush.msra.mxu0 %v315
    %682 = vmatpush.msra.mxu0 %v311
    %683 = vmatpush.msra.mxu0 %v307
    %684 = vmatpush.msra.mxu0 %v303
    %685 = vmatpush.msra.mxu0 %v299
    %686 = vmatpush.msra.mxu0 %v295
    %687 = vmatpush.msra.mxu0 %v291
    %688 = vmatpush.msra.mxu0 %v287
    %689 = vmatpush.msra.mxu0 %v283
    %690 = vmatpush.msra.mxu0 %v279
    %691 = vmatpush.msra.mxu0 %v275
    %692 = vmatpush.msra.mxu0 %v271
    %693 = vmatpush.msra.mxu0 %v267
    %694 = vmatpush.msra.mxu0 %v263
    %695 = vmatmul.f32.gmra.mxu0 %v63
    %v696 = vpop.f32.mrf.mxu0
    %v697 = vadd.f32 %v674, %v696
    %698 = vmatmul.f32.gmra.mxu0 %v67
    %v699 = vpop.f32.mrf.mxu0
    %v700 = vadd.f32 %v677, %v699
    %701 = vdwg.mxu0
    %v702 = vmax.f32 %v421, 0.0
    %v703 = vmax.f32 %v513, 0.0
    %v704 = vmax.f32 %v605, 0.0
    %v705 = vmax.f32 %v697, 0.0
    %v706 = vmax.f32 %v424, 0.0
    %v707 = vmax.f32 %v516, 0.0
    %v708 = vmax.f32 %v608, 0.0
    %v709 = vmax.f32 %v700, 0.0
    %710 = vst [vmem:[#allocation8] sm:$0xff] %v702
    %711 = vst [vmem:[#allocation8 + $0x8] sm:$0xff] %v703
    %712 = vst [vmem:[#allocation8 + $0x10] sm:$0xff] %v704
    %713 = vst [vmem:[#allocation8 + $0x18] sm:$0xff] %v705
    %714 = vst [vmem:[#allocation8 + $0x20] sm:$0xff] %v706
    %715 = vst [vmem:[#allocation8 + $0x28] sm:$0xff] %v707
    %716 = vst [vmem:[#allocation8 + $0x30] sm:$0xff] %v708
    %717 = vst [vmem:[#allocation8 + $0x38] sm:$0xff] %v709
    // Predicated region
    $region26: #{tpu_custom_call.1} parent=1 // pred_check
      _
    $region27: #{tpu_custom_call.1} parent=1 // pred_check_branch
      %719 = sbr.rel (0) target = $region29
    $region28: #{tpu_custom_call.1} parent=1 // pred_region
      %721 = vsyncadd [#allocation4], 0
      %s722 = sshll.u32 [#allocation8], 4
      %s723 = int_to_ptr.vmem [resolvable:$true] %s722
      %s724 = sshll.u32 %s3, 4
      %s725 = int_to_ptr.hbm [resolvable:$true] %s724
      %730 = dma.vmem_to_hbm [thread:$0]  %s723, 1024, %s725, [#allocation4], 512, 512, 32
    $region29: #{tpu_custom_call.1} parent=1 // pred_fallthru
      _
    // Predicated region
    $region30: #{tpu_custom_call.1} parent=1 // pred_check
      _
    $region31: #{tpu_custom_call.1} parent=1 // pred_check_branch
      %732 = sbr.rel (0) target = $region33
    $region32: #{tpu_custom_call.1} parent=1 // pred_region
      %734 = dma.done [#allocation4], 1024
    $region33: #{tpu_custom_call.1} parent=1 // pred_fallthru
      _
    %735 = vsyncpa [#allocation3], 1
    %736 = vsyncpa [#allocation6], 1
    %737 = vsyncpa [#allocation4], 1

</llo_original>
